<compile_context>
chip_gen: v7x
topology: tpu7x:2x2x1
jax: 0.10.0
libtpu: 0.0.40
codegen_flags: <defaults>
</compile_context>

<pallas_src>
import jax
import jax.numpy as jnp
from jax.experimental import pallas as pl
from jax.experimental.pallas import tpu as pltpu


def critic_kernel(x_ref, w1_ref, b1_ref, w2_ref, b2_ref, w3_ref, b3_ref, out_ref):
    x = x_ref[...]                                                     # (tb, S)
    # fc1 + ReLU -> (tb, H1)
    h1 = jnp.dot(x, w1_ref[...], preferred_element_type=jnp.float32)
    h1 = jnp.maximum(h1 + b1_ref[...], 0.0)
    # fc2 + ReLU -> (tb, H2)
    h2 = jnp.dot(h1, w2_ref[...], preferred_element_type=jnp.float32)
    h2 = jnp.maximum(h2 + b2_ref[...], 0.0)
    # fc3 (value head) -> (tb, 1)
    v = jnp.dot(h2, w3_ref[...], preferred_element_type=jnp.float32)
    out_ref[...] = (v + b3_ref[0]).astype(out_ref.dtype)


def critic_forward(x, w1, b1, w2, b2, w3, b3, *, tb=512):
    """Forward pass of Critic.

    x : (B, S) float32 (PyTorch batch-major layout)
    w1: (H1, S),  b1: (H1,)   -- PyTorch nn.Linear (out_features, in_features)
    w2: (H2, H1), b2: (H2,)
    w3: (1, H2),  b3: (1,)
    Returns (B, 1) float32.
    """
    B, S = x.shape
    H1 = w1.shape[0]
    H2 = w2.shape[0]

    # Batch tile: multiple of 8 sublanes, capped near the batch size.
    tb = max(8, min(int(tb), pl.cdiv(B, 8) * 8))
    tb = pl.cdiv(tb, 8) * 8
    Bp = pl.cdiv(B, tb) * tb

    # Zero-pad ragged batches (padded rows are sliced off at the end).
    xp = jnp.pad(x, ((0, Bp - B), (0, 0)))                             # (Bp, S)

    # Pre-transpose the (tiny) weights so the kernel runs plain A @ B matmuls.
    w1t = w1.T                                                         # (S,  H1)
    w2t = w2.T                                                         # (H1, H2)
    w3t = w3.T                                                         # (H2, 1)
    b1r = b1.reshape(1, H1)
    b2r = b2.reshape(1, H2)
    b3s = b3.reshape(1)

    out = pl.pallas_call(
        critic_kernel,
        out_shape=jax.ShapeDtypeStruct((Bp, 1), jnp.float32),
        grid=(Bp // tb,),
        in_specs=[
            pl.BlockSpec((tb, S), lambda i: (i, 0)),            # state tile (batch-major)
            pl.BlockSpec((S, H1), lambda i: (0, 0)),             # W1^T (grid-resident)
            pl.BlockSpec((1, H1), lambda i: (0, 0)),             # b1 (row)
            pl.BlockSpec((H1, H2), lambda i: (0, 0)),            # W2^T
            pl.BlockSpec((1, H2), lambda i: (0, 0)),             # b2 (row)
            pl.BlockSpec((H2, 1), lambda i: (0, 0)),             # W3^T (column)
            pl.BlockSpec(memory_space=pltpu.MemorySpace.SMEM),   # b3 scalar
        ],
        out_specs=pl.BlockSpec((tb, 1), lambda i: (i, 0)),
        compiler_params=pltpu.CompilerParams(
            dimension_semantics=("parallel",)),
    )(xp, w1t, b1r, w2t, b2r, w3t, b3s)

    return out[:B]                                                     # (B, 1)


def init_critic_params(key, state_size, hidden=(128, 128)):
    """PyTorch nn.Linear-style init (uniform +/- 1/sqrt(fan_in)).
    Weights stay in PyTorch (out_features, in_features) layout; biases (out,)."""
    sizes = [state_size, hidden[0], hidden[1], 1]
    params = []
    keys = jax.random.split(key, 2 * (len(sizes) - 1))
    for li in range(len(sizes) - 1):
        fan_in, fan_out = sizes[li], sizes[li + 1]
        bound = 1.0 / jnp.sqrt(jnp.float32(fan_in))
        w = jax.random.uniform(keys[2 * li], (fan_out, fan_in),
                               minval=-bound, maxval=bound, dtype=jnp.float32)
        b = jax.random.uniform(keys[2 * li + 1], (fan_out,),
                               minval=-bound, maxval=bound, dtype=jnp.float32)
        params += [w, b]
    return params


def critic_ref(x, w1, b1, w2, b2, w3, b3):
    h1 = jnp.maximum(x @ w1.T + b1, 0.0)
    h2 = jnp.maximum(h1 @ w2.T + b2, 0.0)
    return h2 @ w3.T + b3


if __name__ == "__main__":
    key = jax.random.PRNGKey(0)
    k_x, k_p = jax.random.split(key)

    batch = 300           # ragged on purpose: exercises padding + multi-tile grid
    state_size = 16
    hidden = (128, 128)   # module default

    x = jax.random.normal(k_x, (batch, state_size), dtype=jnp.float32)
    w1, b1, w2, b2, w3, b3 = init_critic_params(k_p, state_size, hidden)

    values = critic_forward(x, w1, b1, w2, b2, w3, b3, tb=128)
    values = jax.block_until_ready(values)

    expected = critic_ref(x, w1, b1, w2, b2, w3, b3)
    assert values.shape == (batch, 1)
    assert jnp.allclose(values, expected, atol=1e-4, rtol=1e-4)

    print("KERNEL_OK")
</pallas_src>

<mosaic_0001>
module attributes {stable_mosaic.version = 11 : i64} {
  func.func @critic_kernel(%arg0: i32, %arg1: memref<128x16xf32, #tpu.memory_space<vmem>>, %arg2: memref<16x128xf32, #tpu.memory_space<vmem>>, %arg3: memref<1x128xf32, #tpu.memory_space<vmem>>, %arg4: memref<128x128xf32, #tpu.memory_space<vmem>>, %arg5: memref<1x128xf32, #tpu.memory_space<vmem>>, %arg6: memref<128x1xf32, #tpu.memory_space<vmem>>, %arg7: memref<1xf32, #tpu.memory_space<smem>>, %arg8: memref<128x1xf32, #tpu.memory_space<vmem>>) attributes {dimension_semantics = [#tpu.dimension_semantics<parallel>], iteration_bounds = array<i64: 3>, scalar_prefetch = 0 : i64, scratch_operands = 0 : i64, tpu.core_type = #tpu.core_type<tc>, window_params = [{transform_indices = @transform_0, window_bounds = array<i64: 128, 16>}, {pipeline_mode = #tpu.pipeline_mode<synchronous>, transform_indices = @transform_1, window_bounds = array<i64: 16, 128>}, {pipeline_mode = #tpu.pipeline_mode<synchronous>, transform_indices = @transform_2, window_bounds = array<i64: 1, 128>}, {pipeline_mode = #tpu.pipeline_mode<synchronous>, transform_indices = @transform_3, window_bounds = array<i64: 128, 128>}, {pipeline_mode = #tpu.pipeline_mode<synchronous>, transform_indices = @transform_4, window_bounds = array<i64: 1, 128>}, {pipeline_mode = #tpu.pipeline_mode<synchronous>, transform_indices = @transform_5, window_bounds = array<i64: 128, 1>}, {transform_indices = @transform_6, window_bounds = array<i64: 1>}, {transform_indices = @transform_7, window_bounds = array<i64: 128, 1>}]} {
    %c0 = arith.constant 0 : index
    %c0_0 = arith.constant 0 : index
    %0 = vector.load %arg1[%c0, %c0_0] : memref<128x16xf32, #tpu.memory_space<vmem>>, vector<128x16xf32>
    %c0_1 = arith.constant 0 : index
    %c0_2 = arith.constant 0 : index
    %1 = vector.load %arg2[%c0_1, %c0_2] : memref<16x128xf32, #tpu.memory_space<vmem>>, vector<16x128xf32>
    %cst = arith.constant dense<0.000000e+00> : vector<128x128xf32>
    %2 = tpu.matmul %0, %1, %cst {dimension_numbers = #tpu.dot_dimension_numbers<[1], [0], [0], [1], [0, 0, 1, 1], [], []>} : vector<128x16xf32>, vector<16x128xf32>, vector<128x128xf32> -> vector<128x128xf32>
    %c0_3 = arith.constant 0 : index
    %c0_4 = arith.constant 0 : index
    %3 = vector.load %arg3[%c0_3, %c0_4] : memref<1x128xf32, #tpu.memory_space<vmem>>, vector<1x128xf32>
    %4 = vector.broadcast %3 : vector<1x128xf32> to vector<128x128xf32>
    %5 = arith.addf %2, %4 : vector<128x128xf32>
    %cst_5 = arith.constant 0.000000e+00 : f32
    %6 = vector.broadcast %cst_5 : f32 to vector<128x128xf32>
    %7 = arith.maximumf %5, %6 : vector<128x128xf32>
    %c0_6 = arith.constant 0 : index
    %c0_7 = arith.constant 0 : index
    %8 = vector.load %arg4[%c0_6, %c0_7] : memref<128x128xf32, #tpu.memory_space<vmem>>, vector<128x128xf32>
    %cst_8 = arith.constant dense<0.000000e+00> : vector<128x128xf32>
    %9 = tpu.matmul %7, %8, %cst_8 {dimension_numbers = #tpu.dot_dimension_numbers<[1], [0], [0], [1], [0, 0, 1, 1], [], []>} : vector<128x128xf32>, vector<128x128xf32>, vector<128x128xf32> -> vector<128x128xf32>
    %c0_9 = arith.constant 0 : index
    %c0_10 = arith.constant 0 : index
    %10 = vector.load %arg5[%c0_9, %c0_10] : memref<1x128xf32, #tpu.memory_space<vmem>>, vector<1x128xf32>
    %11 = vector.broadcast %10 : vector<1x128xf32> to vector<128x128xf32>
    %12 = arith.addf %9, %11 : vector<128x128xf32>
    %cst_11 = arith.constant 0.000000e+00 : f32
    %13 = vector.broadcast %cst_11 : f32 to vector<128x128xf32>
    %14 = arith.maximumf %12, %13 : vector<128x128xf32>
    %c0_12 = arith.constant 0 : index
    %c0_13 = arith.constant 0 : index
    %15 = vector.load %arg6[%c0_12, %c0_13] : memref<128x1xf32, #tpu.memory_space<vmem>>, vector<128x1xf32>
    %cst_14 = arith.constant dense<0.000000e+00> : vector<128x1xf32>
    %16 = tpu.matmul %14, %15, %cst_14 {dimension_numbers = #tpu.dot_dimension_numbers<[1], [0], [0], [1], [0, 0, 1, 1], [], []>} : vector<128x128xf32>, vector<128x1xf32>, vector<128x1xf32> -> vector<128x1xf32>
    %c0_15 = arith.constant 0 : index
    %17 = memref.load %arg7[%c0_15] : memref<1xf32, #tpu.memory_space<smem>>
    %18 = vector.broadcast %17 : f32 to vector<128x1xf32>
    %19 = arith.addf %16, %18 : vector<128x1xf32>
    %c0_16 = arith.constant 0 : index
    %c0_17 = arith.constant 0 : index
    %20 = vector.load %arg8[%c0_16, %c0_17] : memref<128x1xf32, #tpu.memory_space<vmem>>, vector<128x1xf32>
    tpu.vector_store %arg8[%c0_16, %c0_17], %19 {strides = array<i32>} : memref<128x1xf32, #tpu.memory_space<vmem>>, vector<128x1xf32>,
    return
  }
  func.func @transform_0(%arg0: i32) -> (i32, i32) {
    %c0_i32 = arith.constant 0 : i32
    %c0_i32_0 = arith.constant 0 : i32
    return %arg0, %c0_i32 : i32, i32
  }
  func.func @transform_1(%arg0: i32) -> (i32, i32) {
    %c0_i32 = arith.constant 0 : i32
    %c0_i32_0 = arith.constant 0 : i32
    %c0_i32_1 = arith.constant 0 : i32
    return %c0_i32, %c0_i32_0 : i32, i32
  }
  func.func @transform_2(%arg0: i32) -> (i32, i32) {
    %c0_i32 = arith.constant 0 : i32
    %c0_i32_0 = arith.constant 0 : i32
    %c0_i32_1 = arith.constant 0 : i32
    return %c0_i32, %c0_i32_0 : i32, i32
  }
  func.func @transform_3(%arg0: i32) -> (i32, i32) {
    %c0_i32 = arith.constant 0 : i32
    %c0_i32_0 = arith.constant 0 : i32
    %c0_i32_1 = arith.constant 0 : i32
    return %c0_i32, %c0_i32_0 : i32, i32
  }
  func.func @transform_4(%arg0: i32) -> (i32, i32) {
    %c0_i32 = arith.constant 0 : i32
    %c0_i32_0 = arith.constant 0 : i32
    %c0_i32_1 = arith.constant 0 : i32
    return %c0_i32, %c0_i32_0 : i32, i32
  }
  func.func @transform_5(%arg0: i32) -> (i32, i32) {
    %c0_i32 = arith.constant 0 : i32
    %c0_i32_0 = arith.constant 0 : i32
    %c0_i32_1 = arith.constant 0 : i32
    return %c0_i32, %c0_i32_0 : i32, i32
  }
  func.func @transform_6(%arg0: i32) -> i32 {
    %c0_i32 = arith.constant 0 : i32
    %c0_i32_0 = arith.constant 0 : i32
    return %c0_i32 : i32
  }
  func.func @transform_7(%arg0: i32) -> (i32, i32) {
    %c0_i32 = arith.constant 0 : i32
    %c0_i32_0 = arith.constant 0 : i32
    return %arg0, %c0_i32 : i32, i32
  }
}

</mosaic_0001>

<llo_original>
// kernel: tpu_custom_call.1
$region0: #{tpu_custom_call.1}
  #allocation0 [shape = 'u32[]', space=smem, size = 0x4, offset = 0x4, fixed_abs, tag = 'smem constant byte address 0x4 - core index']
  #allocation1 [shape = 'u32[144,128]{1,0:T(1,128)}', space=vmem, size = 0x12000, scoped, tag = 'internal scratch']
  #allocation2 [shape = 'f32[1]{0:T(128)S(6)}', space=smem, size = 0x200, scoped, tag = 'scoped memory for tpu_custom_call.1']
  %s0 = inlined_call_operand.vmem [shape: f32[384,16], index: 0, kind: input, shape index: {}]
  %s1 = inlined_call_operand.vmem [shape: f32[16,128], index: 1, kind: input, shape index: {}]
  %s2 = inlined_call_operand.vmem [shape: f32[1,128], index: 2, kind: input, shape index: {}]
  %s3 = inlined_call_operand.vmem [shape: f32[128,128], index: 3, kind: input, shape index: {}]
  %s4 = inlined_call_operand.vmem [shape: f32[1,128], index: 4, kind: input, shape index: {}]
  %s5 = inlined_call_operand.vmem [shape: f32[128,1], index: 5, kind: input, shape index: {}]
  %s6 = inlined_call_operand.<no memory space> [shape: f32[1], index: 6, kind: input, shape index: {}]
  %s7 = inlined_call_operand.vmem [shape: f32[384,1], index: 7, kind: output, shape index: {}]
  %s8 = sld [smem:[#allocation0]]
  $region61: #{tpu_custom_call.1} parent=0
    _
  %s10 = ssub.s32 1, %s8
  %s11 = scalar_select 0, %s10, %s8
  %12 = sst [smem:[#allocation2]] %s6
  loop: start=0, step=1, limit=5
  $region2: #{tpu_custom_call.1} parent=0 // loop_pre_header
    _
  $region3: #{tpu_custom_call.1} parent=0 // loop_header
    %s14 = sphi 0, %s18
    %p15 = scmp.ge.s32.totalorder %s14, 5
    %s24 = sphi 0, %s26
    %s27 = sphi 0, %s24
    %s28 = sphi 0, %s27
    %s44 = sphi 0, %s28
    %s48 = sphi 0, %s48
    %s50 = sphi 0, %s48
    %s51 = sphi 0, %s50
    %s65 = sphi 0, %s51
    %s69 = sphi 0, %s69
    %s71 = sphi 0, %s69
    %s72 = sphi 0, %s71
    %s86 = sphi 0, %s72
    %s90 = sphi 0, %s90
    %s92 = sphi 0, %s90
    %s93 = sphi 0, %s92
    %s107 = sphi 0, %s93
    %s111 = sphi 0, %s111
    %s113 = sphi 0, %s111
    %s114 = sphi 0, %s113
    %s128 = sphi 0, %s114
    %s132 = sphi 0, %s132
    %s134 = sphi 0, %s132
    %s135 = sphi 0, %s134
    %s149 = sphi 0, %s135
    %s153 = sphi 0, %s153
    %s155 = sphi 0, %s153
    %s156 = sphi 0, %s155
    %s170 = sphi 0, %s156
    %s176 = sphi 0, %s178
    %s179 = sphi 0, %s176
    %s180 = sphi 0, %s179
    %s196 = sphi 0, %s180
  $region4: #{tpu_custom_call.1} parent=0 // loop_header_branch
    %17 = sbr.rel (%p15) target = $region8
  $region5: #{tpu_custom_call.1} parent=0 // loop_body
    %s19 = ssub.s32 %s14, 1
    %s20 = ssub.s32 %s14, 2
    %s21 = sadd.s32 %s14, 1
    %s22 = ssub.s32 %s14, %s21
    %p23 = scmp.eq.s32.totalorder %s22, 0
    %s25 = sadd.s32 %s24, 1
    %s26 = scalar_select %p23, %s24, %s25
    %p29 = pneg %p23
    %p30 = scmp.eq.s32.totalorder %s14, 2
    %p31 = por %p29, %p30
    %p32 = scmp.ne.s32.totalorder %s24, %s27
    %p33 = scmp.eq.s32.totalorder %s14, 0
    %p34 = por %p32, %p33
    %p35 = scmp.ne.s32.totalorder %s24, %s27
    %p36 = scmp.eq.s32.totalorder %s19, 2
    %p37 = por %p35, %p36
    %p38 = scmp.ne.s32.totalorder %s27, %s28
    %p39 = scmp.eq.s32.totalorder %s19, 0
    %p40 = por %p38, %p39
    %p41 = scmp.ne.s32.totalorder %s27, %s28
    %p42 = scmp.eq.s32.totalorder %s20, 2
    %p43 = por %p41, %p42
    %p45 = scmp.ne.s32.totalorder %s28, %s44
    %p46 = scmp.eq.s32.totalorder %s20, 0
    %p47 = por %p45, %p46
    %s49 = sadd.s32 %s48, 1
    %p52 = scmp.eq.s32.totalorder %s14, 2
    %p53 = scmp.ne.s32.totalorder %s48, %s50
    %p54 = scmp.eq.s32.totalorder %s14, 0
    %p55 = por %p53, %p54
    %p56 = scmp.ne.s32.totalorder %s48, %s50
    %p57 = scmp.eq.s32.totalorder %s19, 2
    %p58 = por %p56, %p57
    %p59 = scmp.ne.s32.totalorder %s50, %s51
    %p60 = scmp.eq.s32.totalorder %s19, 0
    %p61 = por %p59, %p60
    %p62 = scmp.ne.s32.totalorder %s50, %s51
    %p63 = scmp.eq.s32.totalorder %s20, 2
    %p64 = por %p62, %p63
    %p66 = scmp.ne.s32.totalorder %s51, %s65
    %p67 = scmp.eq.s32.totalorder %s20, 0
    %p68 = por %p66, %p67
    %s70 = sadd.s32 %s69, 1
    %p73 = scmp.eq.s32.totalorder %s14, 2
    %p74 = scmp.ne.s32.totalorder %s69, %s71
    %p75 = scmp.eq.s32.totalorder %s14, 0
    %p76 = por %p74, %p75
    %p77 = scmp.ne.s32.totalorder %s69, %s71
    %p78 = scmp.eq.s32.totalorder %s19, 2
    %p79 = por %p77, %p78
    %p80 = scmp.ne.s32.totalorder %s71, %s72
    %p81 = scmp.eq.s32.totalorder %s19, 0
    %p82 = por %p80, %p81
    %p83 = scmp.ne.s32.totalorder %s71, %s72
    %p84 = scmp.eq.s32.totalorder %s20, 2
    %p85 = por %p83, %p84
    %p87 = scmp.ne.s32.totalorder %s72, %s86
    %p88 = scmp.eq.s32.totalorder %s20, 0
    %p89 = por %p87, %p88
    %s91 = sadd.s32 %s90, 1
    %p94 = scmp.eq.s32.totalorder %s14, 2
    %p95 = scmp.ne.s32.totalorder %s90, %s92
    %p96 = scmp.eq.s32.totalorder %s14, 0
    %p97 = por %p95, %p96
    %p98 = scmp.ne.s32.totalorder %s90, %s92
    %p99 = scmp.eq.s32.totalorder %s19, 2
    %p100 = por %p98, %p99
    %p101 = scmp.ne.s32.totalorder %s92, %s93
    %p102 = scmp.eq.s32.totalorder %s19, 0
    %p103 = por %p101, %p102
    %p104 = scmp.ne.s32.totalorder %s92, %s93
    %p105 = scmp.eq.s32.totalorder %s20, 2
    %p106 = por %p104, %p105
    %p108 = scmp.ne.s32.totalorder %s93, %s107
    %p109 = scmp.eq.s32.totalorder %s20, 0
    %p110 = por %p108, %p109
    %s112 = sadd.s32 %s111, 1
    %p115 = scmp.eq.s32.totalorder %s14, 2
    %p116 = scmp.ne.s32.totalorder %s111, %s113
    %p117 = scmp.eq.s32.totalorder %s14, 0
    %p118 = por %p116, %p117
    %p119 = scmp.ne.s32.totalorder %s111, %s113
    %p120 = scmp.eq.s32.totalorder %s19, 2
    %p121 = por %p119, %p120
    %p122 = scmp.ne.s32.totalorder %s113, %s114
    %p123 = scmp.eq.s32.totalorder %s19, 0
    %p124 = por %p122, %p123
    %p125 = scmp.ne.s32.totalorder %s113, %s114
    %p126 = scmp.eq.s32.totalorder %s20, 2
    %p127 = por %p125, %p126
    %p129 = scmp.ne.s32.totalorder %s114, %s128
    %p130 = scmp.eq.s32.totalorder %s20, 0
    %p131 = por %p129, %p130
    %s133 = sadd.s32 %s132, 1
    %p136 = scmp.eq.s32.totalorder %s14, 2
    %p137 = scmp.ne.s32.totalorder %s132, %s134
    %p138 = scmp.eq.s32.totalorder %s14, 0
    %p139 = por %p137, %p138
    %p140 = scmp.ne.s32.totalorder %s132, %s134
    %p141 = scmp.eq.s32.totalorder %s19, 2
    %p142 = por %p140, %p141
    %p143 = scmp.ne.s32.totalorder %s134, %s135
    %p144 = scmp.eq.s32.totalorder %s19, 0
    %p145 = por %p143, %p144
    %p146 = scmp.ne.s32.totalorder %s134, %s135
    %p147 = scmp.eq.s32.totalorder %s20, 2
    %p148 = por %p146, %p147
    %p150 = scmp.ne.s32.totalorder %s135, %s149
    %p151 = scmp.eq.s32.totalorder %s20, 0
    %p152 = por %p150, %p151
    %s154 = sadd.s32 %s153, 1
    %p157 = scmp.eq.s32.totalorder %s14, 2
    %p158 = scmp.ne.s32.totalorder %s153, %s155
    %p159 = scmp.eq.s32.totalorder %s14, 0
    %p160 = por %p158, %p159
    %p161 = scmp.ne.s32.totalorder %s153, %s155
    %p162 = scmp.eq.s32.totalorder %s19, 2
    %p163 = por %p161, %p162
    %p164 = scmp.ne.s32.totalorder %s155, %s156
    %p165 = scmp.eq.s32.totalorder %s19, 0
    %p166 = por %p164, %p165
    %p167 = scmp.ne.s32.totalorder %s155, %s156
    %p168 = scmp.eq.s32.totalorder %s20, 2
    %p169 = por %p167, %p168
    %p171 = scmp.ne.s32.totalorder %s156, %s170
    %p172 = scmp.eq.s32.totalorder %s20, 0
    %p173 = por %p171, %p172
    %s174 = ssub.s32 %s14, %s21
    %p175 = scmp.eq.s32.totalorder %s174, 0
    %s177 = sadd.s32 %s176, 1
    %s178 = scalar_select %p175, %s176, %s177
    %p181 = pneg %p175
    %p182 = scmp.eq.s32.totalorder %s14, 2
    %p183 = por %p181, %p182
    %p184 = scmp.ne.s32.totalorder %s176, %s179
    %p185 = scmp.eq.s32.totalorder %s14, 0
    %p186 = por %p184, %p185
    %p187 = scmp.ne.s32.totalorder %s176, %s179
    %p188 = scmp.eq.s32.totalorder %s19, 2
    %p189 = por %p187, %p188
    %p190 = scmp.ne.s32.totalorder %s179, %s180
    %p191 = scmp.eq.s32.totalorder %s19, 0
    %p192 = por %p190, %p191
    %p193 = scmp.ne.s32.totalorder %s179, %s180
    %p194 = scmp.eq.s32.totalorder %s20, 2
    %p195 = por %p193, %p194
    %p197 = scmp.ne.s32.totalorder %s180, %s196
    %p198 = scmp.eq.s32.totalorder %s20, 0
    %p199 = por %p197, %p198
    %p200 = scmp.le.s32.totalorder 1, %s14
    %p201 = scmp.lt.s32.totalorder %s14, 4
    %p202 = pnand %p200, %p201
    %p203 = pneg %p202
    // Predicated region
    $region9: #{tpu_custom_call.1} parent=5 // pred_check
      _
    $region10: #{tpu_custom_call.1} parent=5 // pred_check_branch
      %205 = sbr.rel (%p202) target = $region12
    $region11: #{tpu_custom_call.1} parent=5 // pred_region
      %s206 = ssub.s32 %s14, 1
      // Predicated region
      $region13: #{tpu_custom_call.1} parent=11 // pred_check
        %p207 = pneg %p61
      $region14: #{tpu_custom_call.1} parent=11 // pred_check_branch
        %209 = sbr.rel (%p207) target = $region16
      $region15: #{tpu_custom_call.1} parent=11 // pred_region
        _
      $region16: #{tpu_custom_call.1} parent=11 // pred_fallthru
        _
      // Predicated region
      $region17: #{tpu_custom_call.1} parent=11 // pred_check
        %p210 = pneg %p82
      $region18: #{tpu_custom_call.1} parent=11 // pred_check_branch
        %212 = sbr.rel (%p210) target = $region20
      $region19: #{tpu_custom_call.1} parent=11 // pred_region
        _
      $region20: #{tpu_custom_call.1} parent=11 // pred_fallthru
        _
      // Predicated region
      $region21: #{tpu_custom_call.1} parent=11 // pred_check
        %p213 = pneg %p103
      $region22: #{tpu_custom_call.1} parent=11 // pred_check_branch
        %215 = sbr.rel (%p213) target = $region24
      $region23: #{tpu_custom_call.1} parent=11 // pred_region
        _
      $region24: #{tpu_custom_call.1} parent=11 // pred_fallthru
        _
      // Predicated region
      $region25: #{tpu_custom_call.1} parent=11 // pred_check
        %p216 = pneg %p124
      $region26: #{tpu_custom_call.1} parent=11 // pred_check_branch
        %218 = sbr.rel (%p216) target = $region28
      $region27: #{tpu_custom_call.1} parent=11 // pred_region
        _
      $region28: #{tpu_custom_call.1} parent=11 // pred_fallthru
        _
      // Predicated region
      $region29: #{tpu_custom_call.1} parent=11 // pred_check
        %p219 = pneg %p145
      $region30: #{tpu_custom_call.1} parent=11 // pred_check_branch
        %221 = sbr.rel (%p219) target = $region32
      $region31: #{tpu_custom_call.1} parent=11 // pred_region
        _
      $region32: #{tpu_custom_call.1} parent=11 // pred_fallthru
        _
      // Predicated region
      $region33: #{tpu_custom_call.1} parent=11 // pred_check
        %p222 = pneg %p166
      $region34: #{tpu_custom_call.1} parent=11 // pred_check_branch
        %224 = sbr.rel (%p222) target = $region36
      $region35: #{tpu_custom_call.1} parent=11 // pred_region
        _
      $region36: #{tpu_custom_call.1} parent=11 // pred_fallthru
        _
    $region12: #{tpu_custom_call.1} parent=5 // pred_fallthru
      _
    %p225 = scmp.lt.s32.totalorder %s14, 3
    // Predicated region
    $region37: #{tpu_custom_call.1} parent=5 // pred_check
      %p226 = pneg %p225
    $region38: #{tpu_custom_call.1} parent=5 // pred_check_branch
      %228 = sbr.rel (%p226) target = $region40
    $region39: #{tpu_custom_call.1} parent=5 // pred_region
      // Predicated region
      $region41: #{tpu_custom_call.1} parent=39 // pred_check
        %p229 = pneg %p34
      $region42: #{tpu_custom_call.1} parent=39 // pred_check_branch
        %231 = sbr.rel (%p229) target = $region44
      $region43: #{tpu_custom_call.1} parent=39 // pred_region
        %s232 = smul.u32 16, %s14
        %p233 = scmp.lt.s32.totalorder %s232, 47
        %s234 = scalar_select %p233, %s232, 47
        %s235 = smul.addr %s234, 8
        %s236 = scalar_lea.vmem %s0, %s235
        %s237 = smul.u32 16, %s14
      $region44: #{tpu_custom_call.1} parent=39 // pred_fallthru
        _
    $region40: #{tpu_custom_call.1} parent=5 // pred_fallthru
      _
    %p238 = scmp.le.s32.totalorder 1, %s14
    %p239 = scmp.lt.s32.totalorder %s14, 4
    %p240 = pnand %p238, %p239
    %p241 = pneg %p240
    // Predicated region
    $region45: #{tpu_custom_call.1} parent=5 // pred_check
      _
    $region46: #{tpu_custom_call.1} parent=5 // pred_check_branch
      %243 = sbr.rel (%p240) target = $region48
    $region47: #{tpu_custom_call.1} parent=5 // pred_region
      %s244 = ssub.s32 %s14, 1
      %s245 = smul.u32 16, %s19
      %p246 = scmp.lt.s32.totalorder %s245, 47
      %s247 = scalar_select %p246, %s245, 47
      %s248 = smul.addr %s247, 8
      %s249 = scalar_lea.vmem %s0, %s248
      %p250 = pneg %p40
      %p251 = pneg %p37
      %p252 = pneg %p61
      %p253 = pneg %p58
      %p254 = pneg %p82
      %p255 = pneg %p79
      %p256 = pneg %p103
      %p257 = pneg %p100
      %p258 = pneg %p124
      %p259 = pneg %p121
      %p260 = pneg %p145
      %p261 = pneg %p142
      %p262 = pneg %p166
      %p263 = pneg %p163
      %p264 = pneg %p192
      %p265 = pneg %p189
      %s266 = smul.u32 16, %s19
      %p267 = scmp.lt.s32.totalorder %s266, 47
      %s268 = scalar_select %p267, %s266, 47
      %s269 = smul.addr %s268, 8
      %s270 = scalar_lea.vmem %s7, %s269
      %s271 = smul.u32 16, %s19
      %p272 = scmp.lt.s32.totalorder %s271, 47
      %s273 = scalar_select %p272, %s271, 47
      %s274 = smul.addr %s273, 8
      %s275 = scalar_lea.vmem %s0, %s274
      %s276 = smul.u32 16, %s19
      %s277 = smul.u32 16, %s19
      %p278 = scmp.lt.s32.totalorder %s277, 47
      %s279 = scalar_select %p278, %s277, 47
      %s280 = smul.addr %s279, 8
      %s281 = scalar_lea.vmem %s7, %s280
      %s282 = smul.u32 16, %s19
      %v283 = vld [vmem:[%s275] sm:$0xff]
      %v284 = vld [vmem:[%s275 + $0x8] sm:$0xff]
      %v285 = vld [vmem:[%s275 + $0x10] sm:$0xff]
      %v286 = vld [vmem:[%s275 + $0x18] sm:$0xff]
      %v287 = vld [vmem:[%s275 + $0x20] sm:$0xff]
      %v288 = vld [vmem:[%s275 + $0x28] sm:$0xff]
      %v289 = vld [vmem:[%s275 + $0x30] sm:$0xff]
      %v290 = vld [vmem:[%s275 + $0x38] sm:$0xff]
      %v291 = vld [vmem:[%s275 + $0x40] sm:$0xff]
      %v292 = vld [vmem:[%s275 + $0x48] sm:$0xff]
      %v293 = vld [vmem:[%s275 + $0x50] sm:$0xff]
      %v294 = vld [vmem:[%s275 + $0x58] sm:$0xff]
      %v295 = vld [vmem:[%s275 + $0x60] sm:$0xff]
      %v296 = vld [vmem:[%s275 + $0x68] sm:$0xff]
      %v297 = vld [vmem:[%s275 + $0x70] sm:$0xff]
      %v298 = vld [vmem:[%s275 + $0x78] sm:$0xff]
      %v299 = vld [vmem:[%s1] sm:$0xff]
      %v300 = vld [vmem:[%s1 + $0x8] sm:$0xff]
      %v301 = vld [vmem:[%s2] sm:$0x1]
      %v303 = vlaneseq
      %v304 = vshrl.u32 %v303, 7
      %v305 = vsub.s32 0, %v304
      %v306 = vrot.slane %v301, %v305
      %vm308 = vcmask 130048
      %v310 = vsel %vm308, %v283, 0
      %v313 = vsel %vm308, %v284, 0
      %v316 = vsel %vm308, %v285, 0
      %v319 = vsel %vm308, %v286, 0
      %v322 = vsel %vm308, %v287, 0
      %v325 = vsel %vm308, %v288, 0
      %v328 = vsel %vm308, %v289, 0
      %v331 = vsel %vm308, %v290, 0
      %v334 = vsel %vm308, %v291, 0
      %v337 = vsel %vm308, %v292, 0
      %v340 = vsel %vm308, %v293, 0
      %v343 = vsel %vm308, %v294, 0
      %v346 = vsel %vm308, %v295, 0
      %v349 = vsel %vm308, %v296, 0
      %v352 = vsel %vm308, %v297, 0
      %v355 = vsel %vm308, %v298, 0
      %357 = vmatprep.subr.mxu0 0.0
      %358 = vmatpush1.msra.mxu0 %v299
      %359 = vmatprep.subr.mxu0 0.0
      %360 = vmatpush1.msra.mxu0 %v300
      %361 = vmatprep.subr.mxu0 0.0
      %362 = vmatpush1.msra.mxu0 0.0
      %363 = vmatprep.subr.mxu0 0.0
      %364 = vmatpush1.msra.mxu0 0.0
      %365 = vmatprep.subr.mxu0 0.0
      %366 = vmatpush1.msra.mxu0 0.0
      %367 = vmatprep.subr.mxu0 0.0
      %368 = vmatpush1.msra.mxu0 0.0
      %369 = vmatprep.subr.mxu0 0.0
      %370 = vmatpush1.msra.mxu0 0.0
      %371 = vmatprep.subr.mxu0 0.0
      %372 = vmatpush1.msra.mxu0 0.0
      %373 = vmatprep.subr.mxu0 0.0
      %374 = vmatpush1.msra.mxu0 0.0
      %375 = vmatprep.subr.mxu0 0.0
      %376 = vmatpush1.msra.mxu0 0.0
      %377 = vmatprep.subr.mxu0 0.0
      %378 = vmatpush1.msra.mxu0 0.0
      %379 = vmatprep.subr.mxu0 0.0
      %380 = vmatpush1.msra.mxu0 0.0
      %381 = vmatprep.subr.mxu0 0.0
      %382 = vmatpush1.msra.mxu0 0.0
      %383 = vmatprep.subr.mxu0 0.0
      %384 = vmatpush1.msra.mxu0 0.0
      %385 = vmatprep.subr.mxu0 0.0
      %386 = vmatpush1.msra.mxu0 0.0
      %387 = vmatprep.subr.mxu0 0.0
      %388 = vmatpush1.msra.mxu0 0.0
      %389 = vmatprep.subr.mxu0 0.0
      %390 = vmatpush1.msra.mxu0 0.0
      %391 = vmatprep.subr.mxu0 0.0
      %392 = vmatpush1.msra.mxu0 0.0
      %393 = vmatprep.subr.mxu0 0.0
      %394 = vmatpush1.msra.mxu0 0.0
      %395 = vmatprep.subr.mxu0 0.0
      %396 = vmatpush1.msra.mxu0 0.0
      %397 = vmatprep.subr.mxu0 0.0
      %398 = vmatpush1.msra.mxu0 0.0
      %399 = vmatprep.subr.mxu0 0.0
      %400 = vmatpush1.msra.mxu0 0.0
      %401 = vmatprep.subr.mxu0 0.0
      %402 = vmatpush1.msra.mxu0 0.0
      %403 = vmatprep.subr.mxu0 0.0
      %404 = vmatpush1.msra.mxu0 0.0
      %405 = vmatprep.subr.mxu0 0.0
      %406 = vmatpush1.msra.mxu0 0.0
      %407 = vmatprep.subr.mxu0 0.0
      %408 = vmatpush1.msra.mxu0 0.0
      %409 = vmatprep.subr.mxu0 0.0
      %410 = vmatpush1.msra.mxu0 0.0
      %411 = vmatprep.subr.mxu0 0.0
      %412 = vmatpush1.msra.mxu0 0.0
      %413 = vmatprep.subr.mxu0 0.0
      %414 = vmatpush1.msra.mxu0 0.0
      %415 = vmatprep.subr.mxu0 0.0
      %416 = vmatpush1.msra.mxu0 0.0
      %417 = vmatprep.subr.mxu0 0.0
      %418 = vmatpush1.msra.mxu0 0.0
      %419 = vmatprep.subr.mxu0 0.0
      %420 = vmatpush1.msra.mxu0 0.0
      %421 = vmatprep.mubr.f32.mxu0 0.0
      %422 = vmatmul.mubr.f32.gmra.mrb[0].mxu0 %v310
      %v423 = vpop.f32.mrb[0].mxu0
      %v424 = vadd.f32 %v306, %v423
      %v425 = vpop.f32.mrb[0].mxu0
      %426 = vmatprep.mubr.f32.mxu0 0.0
      %427 = vmatmul.mubr.f32.gmra.mrb[0].mxu0 %v313
      %v428 = vpop.f32.mrb[0].mxu0
      %v429 = vadd.f32 %v306, %v428
      %v430 = vpop.f32.mrb[0].mxu0
      %431 = vmatprep.mubr.f32.mxu0 0.0
      %432 = vmatmul.mubr.f32.gmra.mrb[0].mxu0 %v316
      %v433 = vpop.f32.mrb[0].mxu0
      %v434 = vadd.f32 %v306, %v433
      %v435 = vpop.f32.mrb[0].mxu0
      %436 = vmatprep.mubr.f32.mxu0 0.0
      %437 = vmatmul.mubr.f32.gmra.mrb[0].mxu0 %v319
      %v438 = vpop.f32.mrb[0].mxu0
      %v439 = vadd.f32 %v306, %v438
      %v440 = vpop.f32.mrb[0].mxu0
      %441 = vmatprep.mubr.f32.mxu0 0.0
      %442 = vmatmul.mubr.f32.gmra.mrb[0].mxu0 %v322
      %v443 = vpop.f32.mrb[0].mxu0
      %v444 = vadd.f32 %v306, %v443
      %v445 = vpop.f32.mrb[0].mxu0
      %446 = vmatprep.mubr.f32.mxu0 0.0
      %447 = vmatmul.mubr.f32.gmra.mrb[0].mxu0 %v325
      %v448 = vpop.f32.mrb[0].mxu0
      %v449 = vadd.f32 %v306, %v448
      %v450 = vpop.f32.mrb[0].mxu0
      %451 = vmatprep.mubr.f32.mxu0 0.0
      %452 = vmatmul.mubr.f32.gmra.mrb[0].mxu0 %v328
      %v453 = vpop.f32.mrb[0].mxu0
      %v454 = vadd.f32 %v306, %v453
      %v455 = vpop.f32.mrb[0].mxu0
      %456 = vmatprep.mubr.f32.mxu0 0.0
      %457 = vmatmul.mubr.f32.gmra.mrb[0].mxu0 %v331
      %v458 = vpop.f32.mrb[0].mxu0
      %v459 = vadd.f32 %v306, %v458
      %v460 = vpop.f32.mrb[0].mxu0
      %461 = vmatprep.mubr.f32.mxu0 0.0
      %462 = vmatmul.mubr.f32.gmra.mrb[0].mxu0 %v334
      %v463 = vpop.f32.mrb[0].mxu0
      %v464 = vadd.f32 %v306, %v463
      %v465 = vpop.f32.mrb[0].mxu0
      %466 = vmatprep.mubr.f32.mxu0 0.0
      %467 = vmatmul.mubr.f32.gmra.mrb[0].mxu0 %v337
      %v468 = vpop.f32.mrb[0].mxu0
      %v469 = vadd.f32 %v306, %v468
      %v470 = vpop.f32.mrb[0].mxu0
      %471 = vmatprep.mubr.f32.mxu0 0.0
      %472 = vmatmul.mubr.f32.gmra.mrb[0].mxu0 %v340
      %v473 = vpop.f32.mrb[0].mxu0
      %v474 = vadd.f32 %v306, %v473
      %v475 = vpop.f32.mrb[0].mxu0
      %476 = vmatprep.mubr.f32.mxu0 0.0
      %477 = vmatmul.mubr.f32.gmra.mrb[0].mxu0 %v343
      %v478 = vpop.f32.mrb[0].mxu0
      %v479 = vadd.f32 %v306, %v478
      %v480 = vpop.f32.mrb[0].mxu0
      %481 = vmatprep.mubr.f32.mxu0 0.0
      %482 = vmatmul.mubr.f32.gmra.mrb[0].mxu0 %v346
      %v483 = vpop.f32.mrb[0].mxu0
      %v484 = vadd.f32 %v306, %v483
      %v485 = vpop.f32.mrb[0].mxu0
      %486 = vmatprep.mubr.f32.mxu0 0.0
      %487 = vmatmul.mubr.f32.gmra.mrb[0].mxu0 %v349
      %v488 = vpop.f32.mrb[0].mxu0
      %v489 = vadd.f32 %v306, %v488
      %v490 = vpop.f32.mrb[0].mxu0
      %491 = vmatprep.mubr.f32.mxu0 0.0
      %492 = vmatmul.mubr.f32.gmra.mrb[0].mxu0 %v352
      %v493 = vpop.f32.mrb[0].mxu0
      %v494 = vadd.f32 %v306, %v493
      %v495 = vpop.f32.mrb[0].mxu0
      %496 = vmatprep.mubr.f32.mxu0 0.0
      %497 = vmatmul.mubr.f32.gmra.mrb[0].mxu0 %v355
      %v498 = vpop.f32.mrb[0].mxu0
      %v499 = vadd.f32 %v306, %v498
      %v500 = vpop.f32.mrb[0].mxu0
      %501 = vdwg.mxu0
      %v502 = vmax.f32 %v424, 0.0
      %v503 = vmax.f32 %v429, 0.0
      %v504 = vmax.f32 %v434, 0.0
      %v505 = vmax.f32 %v439, 0.0
      %v506 = vmax.f32 %v444, 0.0
      %v507 = vmax.f32 %v449, 0.0
      %v508 = vmax.f32 %v454, 0.0
      %v509 = vmax.f32 %v459, 0.0
      %v510 = vmax.f32 %v464, 0.0
      %v511 = vmax.f32 %v469, 0.0
      %v512 = vmax.f32 %v474, 0.0
      %v513 = vmax.f32 %v479, 0.0
      %v514 = vmax.f32 %v484, 0.0
      %v515 = vmax.f32 %v489, 0.0
      %v516 = vmax.f32 %v494, 0.0
      %v517 = vmax.f32 %v499, 0.0
      %v518 = vld [vmem:[%s3] sm:$0xff]
      %v519 = vld [vmem:[%s3 + $0x8] sm:$0xff]
      %v520 = vld [vmem:[%s3 + $0x10] sm:$0xff]
      %v521 = vld [vmem:[%s3 + $0x18] sm:$0xff]
      %v522 = vld [vmem:[%s3 + $0x20] sm:$0xff]
      %v523 = vld [vmem:[%s3 + $0x28] sm:$0xff]
      %v524 = vld [vmem:[%s3 + $0x30] sm:$0xff]
      %v525 = vld [vmem:[%s3 + $0x38] sm:$0xff]
      %v526 = vld [vmem:[%s3 + $0x40] sm:$0xff]
      %v527 = vld [vmem:[%s3 + $0x48] sm:$0xff]
      %v528 = vld [vmem:[%s3 + $0x50] sm:$0xff]
      %v529 = vld [vmem:[%s3 + $0x58] sm:$0xff]
      %v530 = vld [vmem:[%s3 + $0x60] sm:$0xff]
      %v531 = vld [vmem:[%s3 + $0x68] sm:$0xff]
      %v532 = vld [vmem:[%s3 + $0x70] sm:$0xff]
      %v533 = vld [vmem:[%s3 + $0x78] sm:$0xff]
      %v534 = vld [vmem:[%s4] sm:$0x1]
      %v536 = vlaneseq
      %v537 = vshrl.u32 %v536, 7
      %v538 = vsub.s32 0, %v537
      %v539 = vrot.slane %v534, %v538
      %541 = vmatprep.subr.mxu0 0.0
      %542 = vmatpush1.msra.mxu0 %v518
      %543 = vmatprep.subr.mxu0 0.0
      %544 = vmatpush1.msra.mxu0 %v519
      %545 = vmatprep.subr.mxu0 0.0
      %546 = vmatpush1.msra.mxu0 %v520
      %547 = vmatprep.subr.mxu0 0.0
      %548 = vmatpush1.msra.mxu0 %v521
      %549 = vmatprep.subr.mxu0 0.0
      %550 = vmatpush1.msra.mxu0 %v522
      %551 = vmatprep.subr.mxu0 0.0
      %552 = vmatpush1.msra.mxu0 %v523
      %553 = vmatprep.subr.mxu0 0.0
      %554 = vmatpush1.msra.mxu0 %v524
      %555 = vmatprep.subr.mxu0 0.0
      %556 = vmatpush1.msra.mxu0 %v525
      %557 = vmatprep.subr.mxu0 0.0
      %558 = vmatpush1.msra.mxu0 %v526
      %559 = vmatprep.subr.mxu0 0.0
      %560 = vmatpush1.msra.mxu0 %v527
      %561 = vmatprep.subr.mxu0 0.0
      %562 = vmatpush1.msra.mxu0 %v528
      %563 = vmatprep.subr.mxu0 0.0
      %564 = vmatpush1.msra.mxu0 %v529
      %565 = vmatprep.subr.mxu0 0.0
      %566 = vmatpush1.msra.mxu0 %v530
      %567 = vmatprep.subr.mxu0 0.0
      %568 = vmatpush1.msra.mxu0 %v531
      %569 = vmatprep.subr.mxu0 0.0
      %570 = vmatpush1.msra.mxu0 %v532
      %571 = vmatprep.subr.mxu0 0.0
      %572 = vmatpush1.msra.mxu0 %v533
      %573 = vmatprep.subr.mxu0 0.0
      %574 = vmatpush1.msra.mxu0 0.0
      %575 = vmatprep.subr.mxu0 0.0
      %576 = vmatpush1.msra.mxu0 0.0
      %577 = vmatprep.subr.mxu0 0.0
      %578 = vmatpush1.msra.mxu0 0.0
      %579 = vmatprep.subr.mxu0 0.0
      %580 = vmatpush1.msra.mxu0 0.0
      %581 = vmatprep.subr.mxu0 0.0
      %582 = vmatpush1.msra.mxu0 0.0
      %583 = vmatprep.subr.mxu0 0.0
      %584 = vmatpush1.msra.mxu0 0.0
      %585 = vmatprep.subr.mxu0 0.0
      %586 = vmatpush1.msra.mxu0 0.0
      %587 = vmatprep.subr.mxu0 0.0
      %588 = vmatpush1.msra.mxu0 0.0
      %589 = vmatprep.subr.mxu0 0.0
      %590 = vmatpush1.msra.mxu0 0.0
      %591 = vmatprep.subr.mxu0 0.0
      %592 = vmatpush1.msra.mxu0 0.0
      %593 = vmatprep.subr.mxu0 0.0
      %594 = vmatpush1.msra.mxu0 0.0
      %595 = vmatprep.subr.mxu0 0.0
      %596 = vmatpush1.msra.mxu0 0.0
      %597 = vmatprep.subr.mxu0 0.0
      %598 = vmatpush1.msra.mxu0 0.0
      %599 = vmatprep.subr.mxu0 0.0
      %600 = vmatpush1.msra.mxu0 0.0
      %601 = vmatprep.subr.mxu0 0.0
      %602 = vmatpush1.msra.mxu0 0.0
      %603 = vmatprep.subr.mxu0 0.0
      %604 = vmatpush1.msra.mxu0 0.0
      %605 = vmatprep.mubr.f32.mxu0 0.0
      %606 = vmatmul.mubr.f32.gmra.mrb[0].mxu0 %v502
      %v607 = vpop.f32.mrb[0].mxu0
      %v608 = vadd.f32 %v539, %v607
      %v609 = vpop.f32.mrb[0].mxu0
      %610 = vmatprep.mubr.f32.mxu0 0.0
      %611 = vmatmul.mubr.f32.gmra.mrb[0].mxu0 %v503
      %v612 = vpop.f32.mrb[0].mxu0
      %v613 = vadd.f32 %v539, %v612
      %v614 = vpop.f32.mrb[0].mxu0
      %615 = vmatprep.mubr.f32.mxu0 0.0
      %616 = vmatmul.mubr.f32.gmra.mrb[0].mxu0 %v504
      %v617 = vpop.f32.mrb[0].mxu0
      %v618 = vadd.f32 %v539, %v617
      %v619 = vpop.f32.mrb[0].mxu0
      %620 = vmatprep.mubr.f32.mxu0 0.0
      %621 = vmatmul.mubr.f32.gmra.mrb[0].mxu0 %v505
      %v622 = vpop.f32.mrb[0].mxu0
      %v623 = vadd.f32 %v539, %v622
      %v624 = vpop.f32.mrb[0].mxu0
      %625 = vmatprep.mubr.f32.mxu0 0.0
      %626 = vmatmul.mubr.f32.gmra.mrb[0].mxu0 %v506
      %v627 = vpop.f32.mrb[0].mxu0
      %v628 = vadd.f32 %v539, %v627
      %v629 = vpop.f32.mrb[0].mxu0
      %630 = vmatprep.mubr.f32.mxu0 0.0
      %631 = vmatmul.mubr.f32.gmra.mrb[0].mxu0 %v507
      %v632 = vpop.f32.mrb[0].mxu0
      %v633 = vadd.f32 %v539, %v632
      %v634 = vpop.f32.mrb[0].mxu0
      %635 = vmatprep.mubr.f32.mxu0 0.0
      %636 = vmatmul.mubr.f32.gmra.mrb[0].mxu0 %v508
      %v637 = vpop.f32.mrb[0].mxu0
      %v638 = vadd.f32 %v539, %v637
      %v639 = vpop.f32.mrb[0].mxu0
      %640 = vmatprep.mubr.f32.mxu0 0.0
      %641 = vmatmul.mubr.f32.gmra.mrb[0].mxu0 %v509
      %v642 = vpop.f32.mrb[0].mxu0
      %v643 = vadd.f32 %v539, %v642
      %v644 = vpop.f32.mrb[0].mxu0
      %645 = vmatprep.mubr.f32.mxu0 0.0
      %646 = vmatmul.mubr.f32.gmra.mrb[0].mxu0 %v510
      %v647 = vpop.f32.mrb[0].mxu0
      %v648 = vadd.f32 %v539, %v647
      %v649 = vpop.f32.mrb[0].mxu0
      %650 = vmatprep.mubr.f32.mxu0 0.0
      %651 = vmatmul.mubr.f32.gmra.mrb[0].mxu0 %v511
      %v652 = vpop.f32.mrb[0].mxu0
      %v653 = vadd.f32 %v539, %v652
      %v654 = vpop.f32.mrb[0].mxu0
      %655 = vmatprep.mubr.f32.mxu0 0.0
      %656 = vmatmul.mubr.f32.gmra.mrb[0].mxu0 %v512
      %v657 = vpop.f32.mrb[0].mxu0
      %v658 = vadd.f32 %v539, %v657
      %v659 = vpop.f32.mrb[0].mxu0
      %660 = vmatprep.mubr.f32.mxu0 0.0
      %661 = vmatmul.mubr.f32.gmra.mrb[0].mxu0 %v513
      %v662 = vpop.f32.mrb[0].mxu0
      %v663 = vadd.f32 %v539, %v662
      %v664 = vpop.f32.mrb[0].mxu0
      %665 = vmatprep.mubr.f32.mxu0 0.0
      %666 = vmatmul.mubr.f32.gmra.mrb[0].mxu0 %v514
      %v667 = vpop.f32.mrb[0].mxu0
      %v668 = vadd.f32 %v539, %v667
      %v669 = vpop.f32.mrb[0].mxu0
      %670 = vmatprep.mubr.f32.mxu0 0.0
      %671 = vmatmul.mubr.f32.gmra.mrb[0].mxu0 %v515
      %v672 = vpop.f32.mrb[0].mxu0
      %v673 = vadd.f32 %v539, %v672
      %v674 = vpop.f32.mrb[0].mxu0
      %675 = vmatprep.mubr.f32.mxu0 0.0
      %676 = vmatmul.mubr.f32.gmra.mrb[0].mxu0 %v516
      %v677 = vpop.f32.mrb[0].mxu0
      %v678 = vadd.f32 %v539, %v677
      %v679 = vpop.f32.mrb[0].mxu0
      %680 = vmatprep.mubr.f32.mxu0 0.0
      %681 = vmatmul.mubr.f32.gmra.mrb[0].mxu0 %v517
      %v682 = vpop.f32.mrb[0].mxu0
      %v683 = vadd.f32 %v539, %v682
      %v684 = vpop.f32.mrb[0].mxu0
      %685 = vdwg.mxu0
      %v686 = vmax.f32 %v608, 0.0
      %v687 = vmax.f32 %v613, 0.0
      %v688 = vmax.f32 %v618, 0.0
      %v689 = vmax.f32 %v623, 0.0
      %v690 = vmax.f32 %v628, 0.0
      %v691 = vmax.f32 %v633, 0.0
      %v692 = vmax.f32 %v638, 0.0
      %v693 = vmax.f32 %v643, 0.0
      %v694 = vmax.f32 %v648, 0.0
      %v695 = vmax.f32 %v653, 0.0
      %v696 = vmax.f32 %v658, 0.0
      %v697 = vmax.f32 %v663, 0.0
      %v698 = vmax.f32 %v668, 0.0
      %v699 = vmax.f32 %v673, 0.0
      %v700 = vmax.f32 %v678, 0.0
      %v701 = vmax.f32 %v683, 0.0
      %v702 = vld [vmem:[%s5] sm:$0xff]
      %v703 = vld [vmem:[%s5 + $0x8] sm:$0xff]
      %v704 = vld [vmem:[%s5 + $0x10] sm:$0xff]
      %v705 = vld [vmem:[%s5 + $0x18] sm:$0xff]
      %v706 = vld [vmem:[%s5 + $0x20] sm:$0xff]
      %v707 = vld [vmem:[%s5 + $0x28] sm:$0xff]
      %v708 = vld [vmem:[%s5 + $0x30] sm:$0xff]
      %v709 = vld [vmem:[%s5 + $0x38] sm:$0xff]
      %v710 = vld [vmem:[%s5 + $0x40] sm:$0xff]
      %v711 = vld [vmem:[%s5 + $0x48] sm:$0xff]
      %v712 = vld [vmem:[%s5 + $0x50] sm:$0xff]
      %v713 = vld [vmem:[%s5 + $0x58] sm:$0xff]
      %v714 = vld [vmem:[%s5 + $0x60] sm:$0xff]
      %v715 = vld [vmem:[%s5 + $0x68] sm:$0xff]
      %v716 = vld [vmem:[%s5 + $0x70] sm:$0xff]
      %v717 = vld [vmem:[%s5 + $0x78] sm:$0xff]
      %s718 = sld [smem:[#allocation2]]
      %v719 = vstv %s718
      %720 = vmatprep.subr.mxu0 0.0
      %721 = vmatpush1.msra.mxu0 %v702
      %722 = vmatprep.subr.mxu0 0.0
      %723 = vmatpush1.msra.mxu0 %v703
      %724 = vmatprep.subr.mxu0 0.0
      %725 = vmatpush1.msra.mxu0 %v704
      %726 = vmatprep.subr.mxu0 0.0
      %727 = vmatpush1.msra.mxu0 %v705
      %728 = vmatprep.subr.mxu0 0.0
      %729 = vmatpush1.msra.mxu0 %v706
      %730 = vmatprep.subr.mxu0 0.0
      %731 = vmatpush1.msra.mxu0 %v707
      %732 = vmatprep.subr.mxu0 0.0
      %733 = vmatpush1.msra.mxu0 %v708
      %734 = vmatprep.subr.mxu0 0.0
      %735 = vmatpush1.msra.mxu0 %v709
      %736 = vmatprep.subr.mxu0 0.0
      %737 = vmatpush1.msra.mxu0 %v710
      %738 = vmatprep.subr.mxu0 0.0
      %739 = vmatpush1.msra.mxu0 %v711
      %740 = vmatprep.subr.mxu0 0.0
      %741 = vmatpush1.msra.mxu0 %v712
      %742 = vmatprep.subr.mxu0 0.0
      %743 = vmatpush1.msra.mxu0 %v713
      %744 = vmatprep.subr.mxu0 0.0
      %745 = vmatpush1.msra.mxu0 %v714
      %746 = vmatprep.subr.mxu0 0.0
      %747 = vmatpush1.msra.mxu0 %v715
      %748 = vmatprep.subr.mxu0 0.0
      %749 = vmatpush1.msra.mxu0 %v716
      %750 = vmatprep.subr.mxu0 0.0
      %751 = vmatpush1.msra.mxu0 %v717
      %752 = vmatprep.subr.mxu0 0.0
      %753 = vmatpush1.msra.mxu0 0.0
      %754 = vmatprep.subr.mxu0 0.0
      %755 = vmatpush1.msra.mxu0 0.0
      %756 = vmatprep.subr.mxu0 0.0
      %757 = vmatpush1.msra.mxu0 0.0
      %758 = vmatprep.subr.mxu0 0.0
      %759 = vmatpush1.msra.mxu0 0.0
      %760 = vmatprep.subr.mxu0 0.0
      %761 = vmatpush1.msra.mxu0 0.0
      %762 = vmatprep.subr.mxu0 0.0
      %763 = vmatpush1.msra.mxu0 0.0
      %764 = vmatprep.subr.mxu0 0.0
      %765 = vmatpush1.msra.mxu0 0.0
      %766 = vmatprep.subr.mxu0 0.0
      %767 = vmatpush1.msra.mxu0 0.0
      %768 = vmatprep.subr.mxu0 0.0
      %769 = vmatpush1.msra.mxu0 0.0
      %770 = vmatprep.subr.mxu0 0.0
      %771 = vmatpush1.msra.mxu0 0.0
      %772 = vmatprep.subr.mxu0 0.0
      %773 = vmatpush1.msra.mxu0 0.0
      %774 = vmatprep.subr.mxu0 0.0
      %775 = vmatpush1.msra.mxu0 0.0
      %776 = vmatprep.subr.mxu0 0.0
      %777 = vmatpush1.msra.mxu0 0.0
      %778 = vmatprep.subr.mxu0 0.0
      %779 = vmatpush1.msra.mxu0 0.0
      %780 = vmatprep.subr.mxu0 0.0
      %781 = vmatpush1.msra.mxu0 0.0
      %782 = vmatprep.subr.mxu0 0.0
      %783 = vmatpush1.msra.mxu0 0.0
      %784 = vmatprep.mubr.f32.mxu0 0.0
      %785 = vmatmul.mubr.f32.gmra.mrb[0].mxu0 %v686
      %v786 = vpop.f32.mrb[0].mxu0
      %v787 = vadd.f32 %v719, %v786
      %v788 = vpop.f32.mrb[0].mxu0
      %789 = vmatprep.mubr.f32.mxu0 0.0
      %790 = vmatmul.mubr.f32.gmra.mrb[0].mxu0 %v687
      %v791 = vpop.f32.mrb[0].mxu0
      %v792 = vadd.f32 %v719, %v791
      %v793 = vpop.f32.mrb[0].mxu0
      %794 = vmatprep.mubr.f32.mxu0 0.0
      %795 = vmatmul.mubr.f32.gmra.mrb[0].mxu0 %v688
      %v796 = vpop.f32.mrb[0].mxu0
      %v797 = vadd.f32 %v719, %v796
      %v798 = vpop.f32.mrb[0].mxu0
      %799 = vmatprep.mubr.f32.mxu0 0.0
      %800 = vmatmul.mubr.f32.gmra.mrb[0].mxu0 %v689
      %v801 = vpop.f32.mrb[0].mxu0
      %v802 = vadd.f32 %v719, %v801
      %v803 = vpop.f32.mrb[0].mxu0
      %804 = vmatprep.mubr.f32.mxu0 0.0
      %805 = vmatmul.mubr.f32.gmra.mrb[0].mxu0 %v690
      %v806 = vpop.f32.mrb[0].mxu0
      %v807 = vadd.f32 %v719, %v806
      %v808 = vpop.f32.mrb[0].mxu0
      %809 = vmatprep.mubr.f32.mxu0 0.0
      %810 = vmatmul.mubr.f32.gmra.mrb[0].mxu0 %v691
      %v811 = vpop.f32.mrb[0].mxu0
      %v812 = vadd.f32 %v719, %v811
      %v813 = vpop.f32.mrb[0].mxu0
      %814 = vmatprep.mubr.f32.mxu0 0.0
      %815 = vmatmul.mubr.f32.gmra.mrb[0].mxu0 %v692
      %v816 = vpop.f32.mrb[0].mxu0
      %v817 = vadd.f32 %v719, %v816
      %v818 = vpop.f32.mrb[0].mxu0
      %819 = vmatprep.mubr.f32.mxu0 0.0
      %820 = vmatmul.mubr.f32.gmra.mrb[0].mxu0 %v693
      %v821 = vpop.f32.mrb[0].mxu0
      %v822 = vadd.f32 %v719, %v821
      %v823 = vpop.f32.mrb[0].mxu0
      %824 = vmatprep.mubr.f32.mxu0 0.0
      %825 = vmatmul.mubr.f32.gmra.mrb[0].mxu0 %v694
      %v826 = vpop.f32.mrb[0].mxu0
      %v827 = vadd.f32 %v719, %v826
      %v828 = vpop.f32.mrb[0].mxu0
      %829 = vmatprep.mubr.f32.mxu0 0.0
      %830 = vmatmul.mubr.f32.gmra.mrb[0].mxu0 %v695
      %v831 = vpop.f32.mrb[0].mxu0
      %v832 = vadd.f32 %v719, %v831
      %v833 = vpop.f32.mrb[0].mxu0
      %834 = vmatprep.mubr.f32.mxu0 0.0
      %835 = vmatmul.mubr.f32.gmra.mrb[0].mxu0 %v696
      %v836 = vpop.f32.mrb[0].mxu0
      %v837 = vadd.f32 %v719, %v836
      %v838 = vpop.f32.mrb[0].mxu0
      %839 = vmatprep.mubr.f32.mxu0 0.0
      %840 = vmatmul.mubr.f32.gmra.mrb[0].mxu0 %v697
      %v841 = vpop.f32.mrb[0].mxu0
      %v842 = vadd.f32 %v719, %v841
      %v843 = vpop.f32.mrb[0].mxu0
      %844 = vmatprep.mubr.f32.mxu0 0.0
      %845 = vmatmul.mubr.f32.gmra.mrb[0].mxu0 %v698
      %v846 = vpop.f32.mrb[0].mxu0
      %v847 = vadd.f32 %v719, %v846
      %v848 = vpop.f32.mrb[0].mxu0
      %849 = vmatprep.mubr.f32.mxu0 0.0
      %850 = vmatmul.mubr.f32.gmra.mrb[0].mxu0 %v699
      %v851 = vpop.f32.mrb[0].mxu0
      %v852 = vadd.f32 %v719, %v851
      %v853 = vpop.f32.mrb[0].mxu0
      %854 = vmatprep.mubr.f32.mxu0 0.0
      %855 = vmatmul.mubr.f32.gmra.mrb[0].mxu0 %v700
      %v856 = vpop.f32.mrb[0].mxu0
      %v857 = vadd.f32 %v719, %v856
      %v858 = vpop.f32.mrb[0].mxu0
      %859 = vmatprep.mubr.f32.mxu0 0.0
      %860 = vmatmul.mubr.f32.gmra.mrb[0].mxu0 %v701
      %v861 = vpop.f32.mrb[0].mxu0
      %v862 = vadd.f32 %v719, %v861
      %v863 = vpop.f32.mrb[0].mxu0
      %864 = vdwg.mxu0
      %vm865 = vcmask 7168
      %866 = vst.msk [vmem:[%s281] sm:$0xff] %vm865, %v787
      %867 = vst.msk [vmem:[%s281 + $0x8] sm:$0xff] %vm865, %v792
      %868 = vst.msk [vmem:[%s281 + $0x10] sm:$0xff] %vm865, %v797
      %869 = vst.msk [vmem:[%s281 + $0x18] sm:$0xff] %vm865, %v802
      %870 = vst.msk [vmem:[%s281 + $0x20] sm:$0xff] %vm865, %v807
      %871 = vst.msk [vmem:[%s281 + $0x28] sm:$0xff] %vm865, %v812
      %872 = vst.msk [vmem:[%s281 + $0x30] sm:$0xff] %vm865, %v817
      %873 = vst.msk [vmem:[%s281 + $0x38] sm:$0xff] %vm865, %v822
      %874 = vst.msk [vmem:[%s281 + $0x40] sm:$0xff] %vm865, %v827
      %875 = vst.msk [vmem:[%s281 + $0x48] sm:$0xff] %vm865, %v832
      %876 = vst.msk [vmem:[%s281 + $0x50] sm:$0xff] %vm865, %v837
      %877 = vst.msk [vmem:[%s281 + $0x58] sm:$0xff] %vm865, %v842
      %878 = vst.msk [vmem:[%s281 + $0x60] sm:$0xff] %vm865, %v847
      %879 = vst.msk [vmem:[%s281 + $0x68] sm:$0xff] %vm865, %v852
      %880 = vst.msk [vmem:[%s281 + $0x70] sm:$0xff] %vm865, %v857
      %881 = vst.msk [vmem:[%s281 + $0x78] sm:$0xff] %vm865, %v862
      %s882 = smul.u32 16, %s19
      %p883 = scmp.lt.s32.totalorder %s882, 47
      %s884 = scalar_select %p883, %s882, 47
      %s885 = smul.addr %s884, 8
      %s886 = scalar_lea.vmem %s7, %s885
      // Predicated region
      $region49: #{tpu_custom_call.1} parent=47 // pred_check
        %p887 = pneg %p189
      $region50: #{tpu_custom_call.1} parent=47 // pred_check_branch
        %889 = sbr.rel (%p887) target = $region52
      $region51: #{tpu_custom_call.1} parent=47 // pred_region
        %s890 = smul.u32 16, %s19
      $region52: #{tpu_custom_call.1} parent=47 // pred_fallthru
        _
    $region48: #{tpu_custom_call.1} parent=5 // pred_fallthru
      _
    %p891 = scmp.le.s32.totalorder 2, %s14
    // Predicated region
    $region53: #{tpu_custom_call.1} parent=5 // pred_check
      %p892 = pneg %p891
    $region54: #{tpu_custom_call.1} parent=5 // pred_check_branch
      %894 = sbr.rel (%p892) target = $region56
    $region55: #{tpu_custom_call.1} parent=5 // pred_region
      %s895 = ssub.s32 %s14, 2
      // Predicated region
      $region57: #{tpu_custom_call.1} parent=55 // pred_check
        %p896 = pneg %p195
      $region58: #{tpu_custom_call.1} parent=55 // pred_check_branch
        %898 = sbr.rel (%p896) target = $region60
      $region59: #{tpu_custom_call.1} parent=55 // pred_region
        %s899 = smul.u32 16, %s20
        %p900 = scmp.lt.s32.totalorder %s899, 47
        %s901 = scalar_select %p900, %s899, 47
        %s902 = smul.addr %s901, 8
        %s903 = scalar_lea.vmem %s7, %s902
      $region60: #{tpu_custom_call.1} parent=55 // pred_fallthru
        _
    $region56: #{tpu_custom_call.1} parent=5 // pred_fallthru
      _
  $region6: #{tpu_custom_call.1} parent=0 // loop_footer
    %s18 = sadd.s32 1, %s14
  $region7: #{tpu_custom_call.1} parent=0 // loop_footer_branch
    %13 = sbr.rel target = $region3
  $region8: #{tpu_custom_call.1} parent=0 // loop_exit
    _

</llo_original>
